<compile_context>
chip_gen: v7x
topology: tpu7x:2x2x1
jax: 0.10.0
libtpu: 0.0.40
codegen_flags: <defaults>
</compile_context>

<pallas_src>
import functools

import jax
import jax.numpy as jnp
from jax.experimental import pallas as pl
from jax.experimental.pallas import tpu as pltpu

EPS = 1e-4          # E in the PyTorch module
NEG_SLOPE = 0.01    # F.leaky_relu default


def residual_block_kernel(x_ref, w1_ref, w2_ref, bn_ref, o_ref,
                          *, K, P, L, use_residual):
    Ci, NL = x_ref.shape
    inv_nl = 1.0 / float(NL)

    # ---- hoisted per-tap edge masks (built once, reused by both convs) ----
    # Position within each length-L sample along the flattened N*L lane axis.
    lane = jax.lax.broadcasted_iota(jnp.int32, (1, NL), 1) % L
    masks = []
    for k in range(K):
        d = k - P
        if d < 0:
            masks.append(lane >= -d)        # left taps: only left edge invalid
        elif d > 0:
            masks.append(lane < (L - d))    # right taps: only right edge invalid
        else:
            masks.append(None)              # center tap: no masking needed

    def conv(a, w_ref_k):
        # K accumulated matmuls, bf16 MXU operands, f32 accumulation.
        # tap_k[c, p] = a[c, p + (k - P)] within the same sample, else 0 (zero
        # padding).  roll wraps across sample boundaries, but those lanes are
        # exactly the ones the edge mask zeroes (NL is sample-aligned here).
        acc = None
        for k in range(K):
            d = k - P
            tap = a if d == 0 else pltpu.roll(a, shift=(-d) % NL, axis=1)
            if masks[k] is not None:
                tap = jnp.where(masks[k], tap, 0.0)
            part = jnp.dot(w_ref_k[k], tap.astype(jnp.bfloat16),
                           preferred_element_type=jnp.float32)
            acc = part if acc is None else acc + part
        return acc                                            # (Co, NL) f32

    def batchnorm(y, g, b):
        # Training-mode BatchNorm1d: per-channel batch stats over the N*L
        # lanes, biased variance, folded into one scale/shift apply.
        m = jnp.sum(y, axis=1, keepdims=True) * inv_nl
        ex2 = jnp.sum(y * y, axis=1, keepdims=True) * inv_nl
        var = ex2 - m * m             # single-pass f32; eps=1e-4 keeps rsqrt safe
        scale = g * jax.lax.rsqrt(var + EPS)                  # EUP, free slot
        shift = b - m * scale
        return y * scale + shift                              # 2 VPU ops / elem

    def leaky(y):
        return jnp.maximum(y, NEG_SLOPE * y)

    bn = bn_ref[...]                                          # (Co, 4) f32
    g1, b1, g2, b2 = bn[:, 0:1], bn[:, 1:2], bn[:, 2:3], bn[:, 3:4]

    x = x_ref[...]                                            # (Ci, NL) f32

    y = leaky(batchnorm(conv(x, w1_ref), g1, b1))             # conv1+bn1+lrelu
    z = batchnorm(conv(y, w2_ref), g2, b2)                    # conv2+bn2
    if use_residual:               # static: in_channels == out_channels
        z = z + x                  # original slab, already resident, aligned
    o_ref[...] = leaky(z)


def residual_block_cnl(x2d, w1k, w2k, bn_packed, *, K, P, L, use_residual):
    """Layout-native entry: x2d is (C_in, N*L) f32, w*k are (K, C_out, C_in)
    bf16, bn_packed is (C_out, 4) f32 columns [gamma1, beta1, gamma2, beta2]."""
    Ci, NL = x2d.shape
    Co = w1k.shape[1]
    kernel = functools.partial(residual_block_kernel,
                               K=K, P=P, L=L, use_residual=use_residual)
    return pl.pallas_call(
        kernel,
        out_shape=jax.ShapeDtypeStruct((Co, NL), jnp.float32),
        in_specs=[pl.BlockSpec(memory_space=pltpu.MemorySpace.VMEM)] * 4,
        out_specs=pl.BlockSpec(memory_space=pltpu.MemorySpace.VMEM),
        compiler_params=pltpu.CompilerParams(
            vmem_limit_bytes=32 * 1024 * 1024),
    )(x2d, w1k, w2k, bn_packed)


def residual_block(x, w1, g1, b1, w2, g2, b2, *, padding=1):
    """PyTorch-layout wrapper.  x: (N, C_in, L) f32; w*: (C_out, C_in, K) as in
    nn.Conv1d.weight.  A stacked network should keep activations in (C, N*L)
    and call residual_block_cnl directly (relayout once at entry/exit)."""
    N, Ci, L = x.shape
    Co, Ci_w, K = w1.shape
    assert Ci_w == Ci, (Ci_w, Ci)
    # Kernel assumes a 'same' convolution (stride 1, odd K, pad = (K-1)//2);
    # this is also what makes the residual add shape-valid.
    assert K % 2 == 1 and padding == (K - 1) // 2, \
        "residual_block kernel supports stride-1 'same' convs only"
    use_residual = (Ci == Co)

    # Lane-dense layout: channels on sublanes, flattened (N, L) on lanes.
    x2d = jnp.transpose(x, (1, 0, 2)).reshape(Ci, N * L)
    # Weights as K separate (Co, C_in) taps, bf16 for the MXU.
    w1k = jnp.transpose(w1, (2, 0, 1)).astype(jnp.bfloat16)   # (K, Co, Ci)
    w2k = jnp.transpose(w2, (2, 0, 1)).astype(jnp.bfloat16)   # (K, Co, Co)
    # All BN params in a single (Co, 4) slab -> one DMA instead of four.
    bn_packed = jnp.stack([g1, b1, g2, b2], axis=1).astype(jnp.float32)

    out2d = residual_block_cnl(x2d, w1k, w2k, bn_packed,
                               K=K, P=padding, L=L, use_residual=use_residual)
    # Back to PyTorch's (N, C, L).
    return jnp.transpose(out2d.reshape(Co, N, L), (1, 0, 2))


def reference(x, w1, g1, b1, w2, g2, b2, *, padding, use_residual):
    def conv(a, w):
        return jax.lax.conv_general_dilated(
            a, w, window_strides=(1,), padding=[(padding, padding)],
            dimension_numbers=('NCH', 'OIH', 'NCH'))

    def bn(y, g, b):
        m = jnp.mean(y, axis=(0, 2), keepdims=True)
        v = jnp.mean(jnp.square(y - m), axis=(0, 2), keepdims=True)
        return (y - m) / jnp.sqrt(v + EPS) * g.reshape(1, -1, 1) + b.reshape(1, -1, 1)

    y = jax.nn.leaky_relu(bn(conv(x, w1), g1, b1), NEG_SLOPE)
    z = bn(conv(y, w2), g2, b2)
    if use_residual:
        z = z + x
    return jax.nn.leaky_relu(z, NEG_SLOPE)


if __name__ == "__main__":
    # in_channels == out_channels -> residual path active.
    # N*L = 128 so the lane axis of every activation slab is exactly vreg-wide.
    N, C, L, K, P = 2, 8, 64, 3, 1

    key = jax.random.PRNGKey(0)
    k1, k2, k3, k4, k5, k6, k7 = jax.random.split(key, 7)
    x = jax.random.normal(k1, (N, C, L), jnp.float32)
    w1 = 0.3 * jax.random.normal(k2, (C, C, K), jnp.float32)   # conv1.weight
    w2 = 0.3 * jax.random.normal(k3, (C, C, K), jnp.float32)   # conv2.weight
    g1 = 1.0 + 0.1 * jax.random.normal(k4, (C,), jnp.float32)  # bn1.weight
    b1 = 0.1 * jax.random.normal(k5, (C,), jnp.float32)        # bn1.bias
    g2 = 1.0 + 0.1 * jax.random.normal(k6, (C,), jnp.float32)  # bn2.weight
    b2 = 0.1 * jax.random.normal(k7, (C,), jnp.float32)        # bn2.bias

    out = residual_block(x, w1, g1, b1, w2, g2, b2, padding=P)
    out = jax.block_until_ready(out)

    ref = reference(x, w1, g1, b1, w2, g2, b2, padding=P, use_residual=True)
    max_err = float(jnp.max(jnp.abs(out - ref)))
    assert out.shape == (N, C, L), out.shape
    # bf16 MXU operands introduce ~1e-3..1e-2 absolute error vs the f32
    # reference; values are O(1) after BN so these tolerances stay meaningful.
    assert jnp.allclose(out, ref, rtol=2e-2, atol=3e-2), max_err

    print("KERNEL_OK")
</pallas_src>

<mosaic_0001>
module attributes {stable_mosaic.version = 11 : i64} {
  func.func @residual_block_kernel(%arg0: memref<8x128xf32, #tpu.memory_space<vmem>>, %arg1: memref<3x8x8xbf16, #tpu.memory_space<vmem>>, %arg2: memref<3x8x8xbf16, #tpu.memory_space<vmem>>, %arg3: memref<8x4xf32, #tpu.memory_space<vmem>>, %arg4: memref<8x128xf32, #tpu.memory_space<vmem>>) attributes {dimension_semantics = [], scalar_prefetch = 0 : i64, scratch_operands = 0 : i64, tpu.core_type = #tpu.core_type<tc>} {
    %0 = tpu.iota {dimensions = array<i32: 1>} : vector<1x128xi32>
    %c64_i32 = arith.constant 64 : i32
    %c0_i32 = arith.constant 0 : i32
    %1 = arith.cmpi eq, %c64_i32, %c0_i32 : i32
    %c1_i32 = arith.constant 1 : i32
    %2 = arith.select %1, %c1_i32, %c64_i32 : i32
    %3 = vector.broadcast %2 : i32 to vector<1x128xi32>
    %4 = arith.remsi %0, %3 : vector<1x128xi32>
    %c0_i32_0 = arith.constant 0 : i32
    %5 = vector.broadcast %c0_i32_0 : i32 to vector<1x128xi32>
    %6 = arith.cmpi ne, %4, %5 : vector<1x128xi32>
    %c0_i32_1 = arith.constant 0 : i32
    %7 = vector.broadcast %c0_i32_1 : i32 to vector<1x128xi32>
    %8 = arith.cmpi slt, %4, %7 : vector<1x128xi32>
    %c0_i32_2 = arith.constant 0 : i32
    %9 = arith.cmpi slt, %2, %c0_i32_2 : i32
    %10 = vector.broadcast %9 : i1 to vector<1x128xi1>
    %11 = vector.broadcast %10 : vector<1x128xi1> to vector<1x128xi1>
    %12 = arith.xori %8, %11 : vector<1x128xi1>
    %13 = arith.andi %12, %6 : vector<1x128xi1>
    %14 = vector.broadcast %2 : i32 to vector<1x128xi32>
    %15 = arith.addi %4, %14 : vector<1x128xi32>
    %16 = arith.select %13, %15, %4 : vector<1x128xi1>, vector<1x128xi32>
    %c1_i32_3 = arith.constant 1 : i32
    %17 = vector.broadcast %c1_i32_3 : i32 to vector<1x128xi32>
    %18 = arith.cmpi sge, %16, %17 : vector<1x128xi32>
    %c63_i32 = arith.constant 63 : i32
    %19 = vector.broadcast %c63_i32 : i32 to vector<1x128xi32>
    %20 = arith.cmpi slt, %16, %19 : vector<1x128xi32>
    %c0 = arith.constant 0 : index
    %c0_4 = arith.constant 0 : index
    %21 = vector.load %arg3[%c0, %c0_4] : memref<8x4xf32, #tpu.memory_space<vmem>>, vector<8x4xf32>
    %22 = vector.extract_strided_slice %21 {offsets = [0, 0], sizes = [8, 1], strides = [1, 1]} : vector<8x4xf32> to vector<8x1xf32>
    %23 = vector.extract_strided_slice %21 {offsets = [0, 1], sizes = [8, 1], strides = [1, 1]} : vector<8x4xf32> to vector<8x1xf32>
    %24 = vector.extract_strided_slice %21 {offsets = [0, 2], sizes = [8, 1], strides = [1, 1]} : vector<8x4xf32> to vector<8x1xf32>
    %25 = vector.extract_strided_slice %21 {offsets = [0, 3], sizes = [8, 1], strides = [1, 1]} : vector<8x4xf32> to vector<8x1xf32>
    %c0_5 = arith.constant 0 : index
    %c0_6 = arith.constant 0 : index
    %26 = vector.load %arg0[%c0_5, %c0_6] : memref<8x128xf32, #tpu.memory_space<vmem>>, vector<8x128xf32>
    %c1_i32_7 = arith.constant 1 : i32
    %27 = tpu.dynamic_rotate %26 by %c1_i32_7 dim 1 : vector<8x128xf32>, i32 -> vector<8x128xf32>
    %cst = arith.constant 0.000000e+00 : f32
    %28 = vector.shape_cast %18 : vector<1x128xi1> to vector<1x128xi1>
    %29 = vector.broadcast %28 : vector<1x128xi1> to vector<8x128xi1>
    %30 = vector.broadcast %cst : f32 to vector<8x128xf32>
    %31 = arith.select %29, %27, %30 : vector<8x128xi1>, vector<8x128xf32>
    %c0_8 = arith.constant 0 : index
    %c0_9 = arith.constant 0 : index
    %c0_10 = arith.constant 0 : index
    %32 = vector.load %arg1[%c0_8, %c0_9, %c0_10] : memref<3x8x8xbf16, #tpu.memory_space<vmem>>, vector<1x8x8xbf16>
    %33 = vector.shape_cast %32 : vector<1x8x8xbf16> to vector<8x8xbf16>
    %34 = arith.truncf %31 : vector<8x128xf32> to vector<8x128xbf16>
    %cst_11 = arith.constant dense<0.000000e+00> : vector<8x128xf32>
    %35 = tpu.matmul %33, %34, %cst_11 {dimension_numbers = #tpu.dot_dimension_numbers<[1], [0], [0], [1], [0, 0, 1, 1], [], []>} : vector<8x8xbf16>, vector<8x128xbf16>, vector<8x128xf32> -> vector<8x128xf32>
    %c1 = arith.constant 1 : index
    %c0_12 = arith.constant 0 : index
    %c0_13 = arith.constant 0 : index
    %36 = vector.load %arg1[%c1, %c0_12, %c0_13] : memref<3x8x8xbf16, #tpu.memory_space<vmem>>, vector<1x8x8xbf16>
    %37 = vector.shape_cast %36 : vector<1x8x8xbf16> to vector<8x8xbf16>
    %38 = arith.truncf %26 : vector<8x128xf32> to vector<8x128xbf16>
    %cst_14 = arith.constant dense<0.000000e+00> : vector<8x128xf32>
    %39 = tpu.matmul %37, %38, %cst_14 {dimension_numbers = #tpu.dot_dimension_numbers<[1], [0], [0], [1], [0, 0, 1, 1], [], []>} : vector<8x8xbf16>, vector<8x128xbf16>, vector<8x128xf32> -> vector<8x128xf32>
    %40 = arith.addf %35, %39 : vector<8x128xf32>
    %c127_i32 = arith.constant 127 : i32
    %41 = tpu.dynamic_rotate %26 by %c127_i32 dim 1 : vector<8x128xf32>, i32 -> vector<8x128xf32>
    %cst_15 = arith.constant 0.000000e+00 : f32
    %42 = vector.shape_cast %20 : vector<1x128xi1> to vector<1x128xi1>
    %43 = vector.broadcast %42 : vector<1x128xi1> to vector<8x128xi1>
    %44 = vector.broadcast %cst_15 : f32 to vector<8x128xf32>
    %45 = arith.select %43, %41, %44 : vector<8x128xi1>, vector<8x128xf32>
    %c2 = arith.constant 2 : index
    %c0_16 = arith.constant 0 : index
    %c0_17 = arith.constant 0 : index
    %46 = vector.load %arg1[%c2, %c0_16, %c0_17] : memref<3x8x8xbf16, #tpu.memory_space<vmem>>, vector<1x8x8xbf16>
    %47 = vector.shape_cast %46 : vector<1x8x8xbf16> to vector<8x8xbf16>
    %48 = arith.truncf %45 : vector<8x128xf32> to vector<8x128xbf16>
    %cst_18 = arith.constant dense<0.000000e+00> : vector<8x128xf32>
    %49 = tpu.matmul %47, %48, %cst_18 {dimension_numbers = #tpu.dot_dimension_numbers<[1], [0], [0], [1], [0, 0, 1, 1], [], []>} : vector<8x8xbf16>, vector<8x128xbf16>, vector<8x128xf32> -> vector<8x128xf32>
    %50 = arith.addf %40, %49 : vector<8x128xf32>
    %cst_19 = arith.constant dense<0.000000e+00> : vector<8xf32>
    %51 = vector.multi_reduction <add>, %50, %cst_19 [1] : vector<8x128xf32> to vector<8xf32>
    %52 = vector.shape_cast %51 : vector<8xf32> to vector<8x1xf32>
    %cst_20 = arith.constant 7.812500e-03 : f32
    %53 = vector.broadcast %cst_20 : f32 to vector<8x1xf32>
    %54 = arith.mulf %52, %53 : vector<8x1xf32>
    %55 = arith.mulf %50, %50 : vector<8x128xf32>
    %cst_21 = arith.constant dense<0.000000e+00> : vector<8xf32>
    %56 = vector.multi_reduction <add>, %55, %cst_21 [1] : vector<8x128xf32> to vector<8xf32>
    %57 = vector.shape_cast %56 : vector<8xf32> to vector<8x1xf32>
    %cst_22 = arith.constant 7.812500e-03 : f32
    %58 = vector.broadcast %cst_22 : f32 to vector<8x1xf32>
    %59 = arith.mulf %57, %58 : vector<8x1xf32>
    %60 = arith.mulf %54, %54 : vector<8x1xf32>
    %61 = arith.subf %59, %60 : vector<8x1xf32>
    %cst_23 = arith.constant 9.99999974E-5 : f32
    %62 = vector.broadcast %cst_23 : f32 to vector<8x1xf32>
    %63 = arith.addf %61, %62 : vector<8x1xf32>
    %64 = math.rsqrt %63 : vector<8x1xf32>
    %65 = arith.mulf %22, %64 : vector<8x1xf32>
    %66 = arith.mulf %54, %65 : vector<8x1xf32>
    %67 = arith.subf %23, %66 : vector<8x1xf32>
    %68 = vector.broadcast %65 : vector<8x1xf32> to vector<8x128xf32>
    %69 = arith.mulf %50, %68 : vector<8x128xf32>
    %70 = vector.broadcast %67 : vector<8x1xf32> to vector<8x128xf32>
    %71 = arith.addf %69, %70 : vector<8x128xf32>
    %cst_24 = arith.constant 0.00999999977 : f32
    %72 = vector.broadcast %cst_24 : f32 to vector<8x128xf32>
    %73 = arith.mulf %72, %71 : vector<8x128xf32>
    %74 = arith.maximumf %71, %73 : vector<8x128xf32>
    %c1_i32_25 = arith.constant 1 : i32
    %75 = tpu.dynamic_rotate %74 by %c1_i32_25 dim 1 : vector<8x128xf32>, i32 -> vector<8x128xf32>
    %cst_26 = arith.constant 0.000000e+00 : f32
    %76 = vector.shape_cast %18 : vector<1x128xi1> to vector<1x128xi1>
    %77 = vector.broadcast %76 : vector<1x128xi1> to vector<8x128xi1>
    %78 = vector.broadcast %cst_26 : f32 to vector<8x128xf32>
    %79 = arith.select %77, %75, %78 : vector<8x128xi1>, vector<8x128xf32>
    %c0_27 = arith.constant 0 : index
    %c0_28 = arith.constant 0 : index
    %c0_29 = arith.constant 0 : index
    %80 = vector.load %arg2[%c0_27, %c0_28, %c0_29] : memref<3x8x8xbf16, #tpu.memory_space<vmem>>, vector<1x8x8xbf16>
    %81 = vector.shape_cast %80 : vector<1x8x8xbf16> to vector<8x8xbf16>
    %82 = arith.truncf %79 : vector<8x128xf32> to vector<8x128xbf16>
    %cst_30 = arith.constant dense<0.000000e+00> : vector<8x128xf32>
    %83 = tpu.matmul %81, %82, %cst_30 {dimension_numbers = #tpu.dot_dimension_numbers<[1], [0], [0], [1], [0, 0, 1, 1], [], []>} : vector<8x8xbf16>, vector<8x128xbf16>, vector<8x128xf32> -> vector<8x128xf32>
    %c1_31 = arith.constant 1 : index
    %c0_32 = arith.constant 0 : index
    %c0_33 = arith.constant 0 : index
    %84 = vector.load %arg2[%c1_31, %c0_32, %c0_33] : memref<3x8x8xbf16, #tpu.memory_space<vmem>>, vector<1x8x8xbf16>
    %85 = vector.shape_cast %84 : vector<1x8x8xbf16> to vector<8x8xbf16>
    %86 = arith.truncf %74 : vector<8x128xf32> to vector<8x128xbf16>
    %cst_34 = arith.constant dense<0.000000e+00> : vector<8x128xf32>
    %87 = tpu.matmul %85, %86, %cst_34 {dimension_numbers = #tpu.dot_dimension_numbers<[1], [0], [0], [1], [0, 0, 1, 1], [], []>} : vector<8x8xbf16>, vector<8x128xbf16>, vector<8x128xf32> -> vector<8x128xf32>
    %88 = arith.addf %83, %87 : vector<8x128xf32>
    %c127_i32_35 = arith.constant 127 : i32
    %89 = tpu.dynamic_rotate %74 by %c127_i32_35 dim 1 : vector<8x128xf32>, i32 -> vector<8x128xf32>
    %cst_36 = arith.constant 0.000000e+00 : f32
    %90 = vector.shape_cast %20 : vector<1x128xi1> to vector<1x128xi1>
    %91 = vector.broadcast %90 : vector<1x128xi1> to vector<8x128xi1>
    %92 = vector.broadcast %cst_36 : f32 to vector<8x128xf32>
    %93 = arith.select %91, %89, %92 : vector<8x128xi1>, vector<8x128xf32>
    %c2_37 = arith.constant 2 : index
    %c0_38 = arith.constant 0 : index
    %c0_39 = arith.constant 0 : index
    %94 = vector.load %arg2[%c2_37, %c0_38, %c0_39] : memref<3x8x8xbf16, #tpu.memory_space<vmem>>, vector<1x8x8xbf16>
    %95 = vector.shape_cast %94 : vector<1x8x8xbf16> to vector<8x8xbf16>
    %96 = arith.truncf %93 : vector<8x128xf32> to vector<8x128xbf16>
    %cst_40 = arith.constant dense<0.000000e+00> : vector<8x128xf32>
    %97 = tpu.matmul %95, %96, %cst_40 {dimension_numbers = #tpu.dot_dimension_numbers<[1], [0], [0], [1], [0, 0, 1, 1], [], []>} : vector<8x8xbf16>, vector<8x128xbf16>, vector<8x128xf32> -> vector<8x128xf32>
    %98 = arith.addf %88, %97 : vector<8x128xf32>
    %cst_41 = arith.constant dense<0.000000e+00> : vector<8xf32>
    %99 = vector.multi_reduction <add>, %98, %cst_41 [1] : vector<8x128xf32> to vector<8xf32>
    %100 = vector.shape_cast %99 : vector<8xf32> to vector<8x1xf32>
    %cst_42 = arith.constant 7.812500e-03 : f32
    %101 = vector.broadcast %cst_42 : f32 to vector<8x1xf32>
    %102 = arith.mulf %100, %101 : vector<8x1xf32>
    %103 = arith.mulf %98, %98 : vector<8x128xf32>
    %cst_43 = arith.constant dense<0.000000e+00> : vector<8xf32>
    %104 = vector.multi_reduction <add>, %103, %cst_43 [1] : vector<8x128xf32> to vector<8xf32>
    %105 = vector.shape_cast %104 : vector<8xf32> to vector<8x1xf32>
    %cst_44 = arith.constant 7.812500e-03 : f32
    %106 = vector.broadcast %cst_44 : f32 to vector<8x1xf32>
    %107 = arith.mulf %105, %106 : vector<8x1xf32>
    %108 = arith.mulf %102, %102 : vector<8x1xf32>
    %109 = arith.subf %107, %108 : vector<8x1xf32>
    %cst_45 = arith.constant 9.99999974E-5 : f32
    %110 = vector.broadcast %cst_45 : f32 to vector<8x1xf32>
    %111 = arith.addf %109, %110 : vector<8x1xf32>
    %112 = math.rsqrt %111 : vector<8x1xf32>
    %113 = arith.mulf %24, %112 : vector<8x1xf32>
    %114 = arith.mulf %102, %113 : vector<8x1xf32>
    %115 = arith.subf %25, %114 : vector<8x1xf32>
    %116 = vector.broadcast %113 : vector<8x1xf32> to vector<8x128xf32>
    %117 = arith.mulf %98, %116 : vector<8x128xf32>
    %118 = vector.broadcast %115 : vector<8x1xf32> to vector<8x128xf32>
    %119 = arith.addf %117, %118 : vector<8x128xf32>
    %120 = arith.addf %119, %26 : vector<8x128xf32>
    %cst_46 = arith.constant 0.00999999977 : f32
    %121 = vector.broadcast %cst_46 : f32 to vector<8x128xf32>
    %122 = arith.mulf %121, %120 : vector<8x128xf32>
    %123 = arith.maximumf %120, %122 : vector<8x128xf32>
    %c0_47 = arith.constant 0 : index
    %c0_48 = arith.constant 0 : index
    %124 = vector.load %arg4[%c0_47, %c0_48] : memref<8x128xf32, #tpu.memory_space<vmem>>, vector<8x128xf32>
    tpu.vector_store %arg4[%c0_47, %c0_48], %123 {strides = array<i32>} : memref<8x128xf32, #tpu.memory_space<vmem>>, vector<8x128xf32>,
    return
  }
}

</mosaic_0001>

<llo_original>
// kernel: tpu_custom_call.1
$region0: #{tpu_custom_call.1}
  #allocation0 [shape = 'u32[]', space=smem, size = 0x4, offset = 0x4, fixed_abs, tag = 'smem constant byte address 0x4 - core index']
  #allocation1 [shape = 'u32[144,128]{1,0:T(1,128)}', space=vmem, size = 0x12000, scoped, tag = 'internal scratch']
  %s0 = inlined_call_operand.hbm [shape: f32[8,128], index: 0, kind: input, shape index: {}]
  %s1 = inlined_call_operand.vmem [shape: bf16[3,8,8], index: 1, kind: input, shape index: {}]
  %s2 = inlined_call_operand.hbm [shape: bf16[3,8,8], index: 2, kind: input, shape index: {}]
  %s3 = inlined_call_operand.vmem [shape: f32[8,4], index: 3, kind: input, shape index: {}]
  %s4 = inlined_call_operand.hbm [shape: f32[8,128], index: 4, kind: output, shape index: {}]
  %s5 = sld [smem:[#allocation0]]
  $region34: #{tpu_custom_call.1} parent=0
    _
  %s7 = ssub.s32 1, %s5
  %s8 = scalar_select 0, %s7, %s5
  $region1: #{tpu_custom_call.1} parent=0
    #allocation2 [shape = 'u8[4096]{0}', space=vmem, size = 0x1000, scoped, tag = 'input window, operand 0, single buffered']
    #allocation3 [shape = 's32[1]{0}', space=sflag, size = 0x4, scoped, tag = 'scoped memory for tpu_custom_call.1']
    #allocation4 [shape = 's32[1]{0}', space=sflag, size = 0x4, scoped, tag = 'scoped memory for tpu_custom_call.1']
    #allocation5 [shape = 'u8[6144]{0}', space=vmem, size = 0x1800, scoped, tag = 'input window, operand 2, single buffered']
    #allocation6 [shape = 's32[1]{0}', space=sflag, size = 0x4, scoped, tag = 'scoped memory for tpu_custom_call.1']
    #allocation7 [shape = 'u8[4096]{0}', space=vmem, size = 0x1000, scoped, tag = 'output window, operand 0, single buffered']
    %9 = vsyncpa [#allocation3], 0
    %10 = vsyncpa [#allocation6], 0
    %11 = vsyncpa [#allocation4], 0
    // Predicated region
    $region2: #{tpu_custom_call.1} parent=1 // pred_check
      _
    $region3: #{tpu_custom_call.1} parent=1 // pred_check_branch
      %13 = sbr.rel (0) target = $region5
    $region4: #{tpu_custom_call.1} parent=1 // pred_region
      %s15 = ssub.s32 128, 128
      %16 = vsyncadd [#allocation3], %s15
      %s18 = sshll.u32 [#allocation2], 4
      %s19 = int_to_ptr.vmem [resolvable:$true] %s18
      %21 = dma.hbm_to_vmem [thread:$0]  %s0, 128, %s19, [#allocation3]
    $region5: #{tpu_custom_call.1} parent=1 // pred_fallthru
      _
    // Predicated region
    $region6: #{tpu_custom_call.1} parent=1 // pred_check
      _
    $region7: #{tpu_custom_call.1} parent=1 // pred_check_branch
      %23 = sbr.rel (0) target = $region9
    $region8: #{tpu_custom_call.1} parent=1 // pred_region
      _
    $region9: #{tpu_custom_call.1} parent=1 // pred_fallthru
      _
    // Predicated region
    $region10: #{tpu_custom_call.1} parent=1 // pred_check
      _
    $region11: #{tpu_custom_call.1} parent=1 // pred_check_branch
      %25 = sbr.rel (0) target = $region13
    $region12: #{tpu_custom_call.1} parent=1 // pred_region
      %s27 = ssub.s32 192, 192
      %28 = vsyncadd [#allocation6], %s27
      %s29 = sshll.u32 [#allocation5], 4
      %s30 = int_to_ptr.vmem [resolvable:$true] %s29
      %35 = dma.hbm_to_vmem [thread:$0]  %s2, 192, %s30, [#allocation6], 64, 64, 4
    $region13: #{tpu_custom_call.1} parent=1 // pred_fallthru
      _
    // Predicated region
    $region14: #{tpu_custom_call.1} parent=1 // pred_check
      _
    $region15: #{tpu_custom_call.1} parent=1 // pred_check_branch
      %37 = sbr.rel (0) target = $region17
    $region16: #{tpu_custom_call.1} parent=1 // pred_region
      _
    $region17: #{tpu_custom_call.1} parent=1 // pred_fallthru
      _
    // Predicated region
    $region18: #{tpu_custom_call.1} parent=1 // pred_check
      _
    $region19: #{tpu_custom_call.1} parent=1 // pred_check_branch
      %39 = sbr.rel (0) target = $region21
    $region20: #{tpu_custom_call.1} parent=1 // pred_region
      %40 = dma.done [#allocation3], 128
    $region21: #{tpu_custom_call.1} parent=1 // pred_fallthru
      _
    // Predicated region
    $region22: #{tpu_custom_call.1} parent=1 // pred_check
      _
    $region23: #{tpu_custom_call.1} parent=1 // pred_check_branch
      %42 = sbr.rel (0) target = $region25
    $region24: #{tpu_custom_call.1} parent=1 // pred_region
      %43 = dma.done [#allocation6], 192
    $region25: #{tpu_custom_call.1} parent=1 // pred_fallthru
      _
    %v45 = vlaneseq
    %v46 = vand.u32 %v45, 127
    %vm47 = vcmp.lt.s32.totalorder %v46, 0
    %v48 = vsub.s32 0, %v46
    %v49 = vsel %vm47, %v48, %v46
    %v50 = vshrl.u32 %v49, 6
    %v51 = vand.u32 %v49, 63
    %v52 = vsub.s32 0, %v51
    %v53 = vsel %vm47, %v52, %v51
    %vm54 = vcmp.ne.s32.totalorder %v53, 0
    %vm55 = vcmp.lt.s32.totalorder %v53, 0
    %vm56 = vmand %vm55, %vm54
    %v57 = vadd.s32 %v53, 64
    %v58 = vsel %vm56, %v57, %v53
    %vm59 = vcmp.ge.s32.totalorder %v58, 1
    %vm60 = vcmp.lt.s32.totalorder %v58, 63
    %v61 = vld [vmem:[%s3] sm:$0xff]
    %v62 = vld [vmem:[#allocation2] sm:$0xff]
    %63 = vrot.lane.b32.xlu0 %v62, 1
    %v64 = vpop.permute.xlu0 %63
    %v65 = vsel %vm59, 1, 0
    %vm66 = vcmp.eq.s32.totalorder %v65, 1
    %v67 = vsel %vm66, %v64, 0.0
    %v68 = vld [vmem:[%s1] sm:$0xf]
    %v69 = vpack.c.bf16 %v67, %v67
    %s70 = scalar_lea.vmem %s1, 4
    %v71 = vld [vmem:[%s70] sm:$0xf]
    %v72 = vpack.c.bf16 %v62, %v62
    %vm73 = vcmask 64512
    %v75 = vsel %vm73, %v71, 0
    %vm77 = vcmask 1043456
    %v79 = vsel %vm77, %v72, 0
    %81 = vmatprep.subr.bf16.mxu0 0
    %82 = vmatpush1.bf16.msra.mxu0 %v79
    %83 = vmatprep.subr.bf16.mxu0 0
    %84 = vmatpush1.bf16.msra.mxu0 0
    %85 = vmatprep.subr.bf16.mxu0 0
    %86 = vmatpush1.bf16.msra.mxu0 0
    %87 = vmatprep.subr.bf16.mxu0 0
    %88 = vmatpush1.bf16.msra.mxu0 0
    %89 = vmatprep.subr.bf16.mxu0 0
    %90 = vmatpush1.bf16.msra.mxu0 0
    %91 = vmatprep.subr.bf16.mxu0 0
    %92 = vmatpush1.bf16.msra.mxu0 0
    %93 = vmatprep.subr.bf16.mxu0 0
    %94 = vmatpush1.bf16.msra.mxu0 0
    %95 = vmatprep.subr.bf16.mxu0 0
    %96 = vmatpush1.bf16.msra.mxu0 0
    %97 = vmatprep.subr.bf16.mxu0 0
    %98 = vmatpush1.bf16.msra.mxu0 0
    %99 = vmatprep.subr.bf16.mxu0 0
    %100 = vmatpush1.bf16.msra.mxu0 0
    %101 = vmatprep.subr.bf16.mxu0 0
    %102 = vmatpush1.bf16.msra.mxu0 0
    %103 = vmatprep.subr.bf16.mxu0 0
    %104 = vmatpush1.bf16.msra.mxu0 0
    %105 = vmatprep.subr.bf16.mxu0 0
    %106 = vmatpush1.bf16.msra.mxu0 0
    %107 = vmatprep.subr.bf16.mxu0 0
    %108 = vmatpush1.bf16.msra.mxu0 0
    %109 = vmatprep.subr.bf16.mxu0 0
    %110 = vmatpush1.bf16.msra.mxu0 0
    %111 = vmatprep.subr.bf16.mxu0 0
    %112 = vmatpush1.bf16.msra.mxu0 0
    %113 = vmatprep.mubr.bf16.mxu0 0
    %114 = vmatmul.mubr.bf16.gmra.mrb[0].mxu0 %v75
    %v115 = vpop.f32.mrb[0].mxu0
    %v116 = vadd.f32 0.0, %v115
    %v117 = vpop.f32.mrb[0].mxu0
    %v118 = vpop.f32.mrb[0].mxu0
    %v119 = vpop.f32.mrb[0].mxu0
    %120 = vdwg.mxu0
    %v122 = vsel %vm73, %v68, 0
    %v125 = vsel %vm77, %v69, 0
    %127 = vmatprep.subr.bf16.mxu0 0
    %128 = vmatpush1.bf16.msra.mxu0 %v125
    %129 = vmatprep.subr.bf16.mxu0 0
    %130 = vmatpush1.bf16.msra.mxu0 0
    %131 = vmatprep.subr.bf16.mxu0 0
    %132 = vmatpush1.bf16.msra.mxu0 0
    %133 = vmatprep.subr.bf16.mxu0 0
    %134 = vmatpush1.bf16.msra.mxu0 0
    %135 = vmatprep.subr.bf16.mxu0 0
    %136 = vmatpush1.bf16.msra.mxu0 0
    %137 = vmatprep.subr.bf16.mxu0 0
    %138 = vmatpush1.bf16.msra.mxu0 0
    %139 = vmatprep.subr.bf16.mxu0 0
    %140 = vmatpush1.bf16.msra.mxu0 0
    %141 = vmatprep.subr.bf16.mxu0 0
    %142 = vmatpush1.bf16.msra.mxu0 0
    %143 = vmatprep.subr.bf16.mxu0 0
    %144 = vmatpush1.bf16.msra.mxu0 0
    %145 = vmatprep.subr.bf16.mxu0 0
    %146 = vmatpush1.bf16.msra.mxu0 0
    %147 = vmatprep.subr.bf16.mxu0 0
    %148 = vmatpush1.bf16.msra.mxu0 0
    %149 = vmatprep.subr.bf16.mxu0 0
    %150 = vmatpush1.bf16.msra.mxu0 0
    %151 = vmatprep.subr.bf16.mxu0 0
    %152 = vmatpush1.bf16.msra.mxu0 0
    %153 = vmatprep.subr.bf16.mxu0 0
    %154 = vmatpush1.bf16.msra.mxu0 0
    %155 = vmatprep.subr.bf16.mxu0 0
    %156 = vmatpush1.bf16.msra.mxu0 0
    %157 = vmatprep.subr.bf16.mxu0 0
    %158 = vmatpush1.bf16.msra.mxu0 0
    %159 = vmatprep.mubr.bf16.mxu0 0
    %160 = vmatmul.mubr.bf16.gmra.mrb[0].mxu0 %v122
    %v161 = vpop.f32.mrb[0].mxu0
    %v162 = vadd.f32 %v116, %v161
    %v163 = vpop.f32.mrb[0].mxu0
    %v164 = vpop.f32.mrb[0].mxu0
    %v165 = vpop.f32.mrb[0].mxu0
    %166 = vdwg.mxu0
    %167 = vrot.lane.b32.xlu0 %v62, 127
    %v168 = vpop.permute.xlu0 %167
    %v169 = vsel %vm60, 1, 0
    %vm170 = vcmp.eq.s32.totalorder %v169, 1
    %v171 = vsel %vm170, %v168, 0.0
    %s172 = scalar_lea.vmem %s1, 8
    %v173 = vld [vmem:[%s172] sm:$0xf]
    %v174 = vpack.c.bf16 %v171, %v171
    %v176 = vsel %vm73, %v173, 0
    %v179 = vsel %vm77, %v174, 0
    %181 = vmatprep.subr.bf16.mxu0 0
    %182 = vmatpush1.bf16.msra.mxu0 %v179
    %183 = vmatprep.subr.bf16.mxu0 0
    %184 = vmatpush1.bf16.msra.mxu0 0
    %185 = vmatprep.subr.bf16.mxu0 0
    %186 = vmatpush1.bf16.msra.mxu0 0
    %187 = vmatprep.subr.bf16.mxu0 0
    %188 = vmatpush1.bf16.msra.mxu0 0
    %189 = vmatprep.subr.bf16.mxu0 0
    %190 = vmatpush1.bf16.msra.mxu0 0
    %191 = vmatprep.subr.bf16.mxu0 0
    %192 = vmatpush1.bf16.msra.mxu0 0
    %193 = vmatprep.subr.bf16.mxu0 0
    %194 = vmatpush1.bf16.msra.mxu0 0
    %195 = vmatprep.subr.bf16.mxu0 0
    %196 = vmatpush1.bf16.msra.mxu0 0
    %197 = vmatprep.subr.bf16.mxu0 0
    %198 = vmatpush1.bf16.msra.mxu0 0
    %199 = vmatprep.subr.bf16.mxu0 0
    %200 = vmatpush1.bf16.msra.mxu0 0
    %201 = vmatprep.subr.bf16.mxu0 0
    %202 = vmatpush1.bf16.msra.mxu0 0
    %203 = vmatprep.subr.bf16.mxu0 0
    %204 = vmatpush1.bf16.msra.mxu0 0
    %205 = vmatprep.subr.bf16.mxu0 0
    %206 = vmatpush1.bf16.msra.mxu0 0
    %207 = vmatprep.subr.bf16.mxu0 0
    %208 = vmatpush1.bf16.msra.mxu0 0
    %209 = vmatprep.subr.bf16.mxu0 0
    %210 = vmatpush1.bf16.msra.mxu0 0
    %211 = vmatprep.subr.bf16.mxu0 0
    %212 = vmatpush1.bf16.msra.mxu0 0
    %213 = vmatprep.mubr.bf16.mxu0 0
    %214 = vmatmul.mubr.bf16.gmra.mrb[0].mxu0 %v176
    %v215 = vpop.f32.mrb[0].mxu0
    %v216 = vadd.f32 0.0, %v215
    %v217 = vpop.f32.mrb[0].mxu0
    %v218 = vpop.f32.mrb[0].mxu0
    %v219 = vpop.f32.mrb[0].mxu0
    %220 = vdwg.mxu0
    %v221 = vadd.f32 %v162, %v216
    %222 = vadd.xlane.f32.xlu0 %v221
    %v223 = vpop.xlane.xlu0 %222
    %v224 = vmul.f32 %v223, 0.0078125
    %v225 = vmul.f32 %v221, %v221
    %226 = vadd.xlane.f32.xlu0 %v225
    %v227 = vpop.xlane.xlu0 %226
    %v228 = vmul.f32 %v227, 0.0078125
    %v229 = vmul.f32 %v224, %v224
    %v230 = vsub.f32 %v228, %v229
    %v231 = vadd.f32 %v230, 0.0001
    %v232 = vrsqrt.pop %v231
    %v233 = vmul.f32 %v61, %v232
    %v234 = vmul.f32 %v224, %v233
    %236 = vrot.lane.b32.xlu0 %v234, 1
    %v237 = vpop.permute.xlu0 %236
    %v239 = vsub.f32 %v61, %v237
    %241 = vset.pattern.permute.xlu0 0
    %242 = vperm.xlu0 %241, %v233
    %v243 = vpop.permute.xlu0 %242
    %v245 = vmul.f32 %v221, %v243
    %247 = vset.pattern.permute.xlu0 1
    %248 = vperm.xlu0 %247, %v239
    %v249 = vpop.permute.xlu0 %248
    %v251 = vadd.f32 %v245, %v249
    %v252 = vmul.f32 %v251, 0.01
    %v253 = vmax.f32 %v251, %v252
    %254 = vrot.lane.b32.xlu0 %v253, 1
    %v255 = vpop.permute.xlu0 %254
    %v256 = vsel %vm66, %v255, 0.0
    %v257 = vld [vmem:[#allocation5] sm:$0xf]
    %v258 = vpack.c.bf16 %v256, %v256
    %s259 = scalar_lea.vmem [#allocation5], 4
    %v260 = vld [vmem:[%s259] sm:$0xf]
    %v261 = vpack.c.bf16 %v253, %v253
    %v263 = vsel %vm73, %v260, 0
    %v266 = vsel %vm77, %v261, 0
    %268 = vmatprep.subr.bf16.mxu0 0
    %269 = vmatpush1.bf16.msra.mxu0 %v266
    %270 = vmatprep.subr.bf16.mxu0 0
    %271 = vmatpush1.bf16.msra.mxu0 0
    %272 = vmatprep.subr.bf16.mxu0 0
    %273 = vmatpush1.bf16.msra.mxu0 0
    %274 = vmatprep.subr.bf16.mxu0 0
    %275 = vmatpush1.bf16.msra.mxu0 0
    %276 = vmatprep.subr.bf16.mxu0 0
    %277 = vmatpush1.bf16.msra.mxu0 0
    %278 = vmatprep.subr.bf16.mxu0 0
    %279 = vmatpush1.bf16.msra.mxu0 0
    %280 = vmatprep.subr.bf16.mxu0 0
    %281 = vmatpush1.bf16.msra.mxu0 0
    %282 = vmatprep.subr.bf16.mxu0 0
    %283 = vmatpush1.bf16.msra.mxu0 0
    %284 = vmatprep.subr.bf16.mxu0 0
    %285 = vmatpush1.bf16.msra.mxu0 0
    %286 = vmatprep.subr.bf16.mxu0 0
    %287 = vmatpush1.bf16.msra.mxu0 0
    %288 = vmatprep.subr.bf16.mxu0 0
    %289 = vmatpush1.bf16.msra.mxu0 0
    %290 = vmatprep.subr.bf16.mxu0 0
    %291 = vmatpush1.bf16.msra.mxu0 0
    %292 = vmatprep.subr.bf16.mxu0 0
    %293 = vmatpush1.bf16.msra.mxu0 0
    %294 = vmatprep.subr.bf16.mxu0 0
    %295 = vmatpush1.bf16.msra.mxu0 0
    %296 = vmatprep.subr.bf16.mxu0 0
    %297 = vmatpush1.bf16.msra.mxu0 0
    %298 = vmatprep.subr.bf16.mxu0 0
    %299 = vmatpush1.bf16.msra.mxu0 0
    %300 = vmatprep.mubr.bf16.mxu0 0
    %301 = vmatmul.mubr.bf16.gmra.mrb[0].mxu0 %v263
    %v302 = vpop.f32.mrb[0].mxu0
    %v303 = vadd.f32 0.0, %v302
    %v304 = vpop.f32.mrb[0].mxu0
    %v305 = vpop.f32.mrb[0].mxu0
    %v306 = vpop.f32.mrb[0].mxu0
    %307 = vdwg.mxu0
    %v309 = vsel %vm73, %v257, 0
    %v312 = vsel %vm77, %v258, 0
    %314 = vmatprep.subr.bf16.mxu0 0
    %315 = vmatpush1.bf16.msra.mxu0 %v312
    %316 = vmatprep.subr.bf16.mxu0 0
    %317 = vmatpush1.bf16.msra.mxu0 0
    %318 = vmatprep.subr.bf16.mxu0 0
    %319 = vmatpush1.bf16.msra.mxu0 0
    %320 = vmatprep.subr.bf16.mxu0 0
    %321 = vmatpush1.bf16.msra.mxu0 0
    %322 = vmatprep.subr.bf16.mxu0 0
    %323 = vmatpush1.bf16.msra.mxu0 0
    %324 = vmatprep.subr.bf16.mxu0 0
    %325 = vmatpush1.bf16.msra.mxu0 0
    %326 = vmatprep.subr.bf16.mxu0 0
    %327 = vmatpush1.bf16.msra.mxu0 0
    %328 = vmatprep.subr.bf16.mxu0 0
    %329 = vmatpush1.bf16.msra.mxu0 0
    %330 = vmatprep.subr.bf16.mxu0 0
    %331 = vmatpush1.bf16.msra.mxu0 0
    %332 = vmatprep.subr.bf16.mxu0 0
    %333 = vmatpush1.bf16.msra.mxu0 0
    %334 = vmatprep.subr.bf16.mxu0 0
    %335 = vmatpush1.bf16.msra.mxu0 0
    %336 = vmatprep.subr.bf16.mxu0 0
    %337 = vmatpush1.bf16.msra.mxu0 0
    %338 = vmatprep.subr.bf16.mxu0 0
    %339 = vmatpush1.bf16.msra.mxu0 0
    %340 = vmatprep.subr.bf16.mxu0 0
    %341 = vmatpush1.bf16.msra.mxu0 0
    %342 = vmatprep.subr.bf16.mxu0 0
    %343 = vmatpush1.bf16.msra.mxu0 0
    %344 = vmatprep.subr.bf16.mxu0 0
    %345 = vmatpush1.bf16.msra.mxu0 0
    %346 = vmatprep.mubr.bf16.mxu0 0
    %347 = vmatmul.mubr.bf16.gmra.mrb[0].mxu0 %v309
    %v348 = vpop.f32.mrb[0].mxu0
    %v349 = vadd.f32 %v303, %v348
    %v350 = vpop.f32.mrb[0].mxu0
    %v351 = vpop.f32.mrb[0].mxu0
    %v352 = vpop.f32.mrb[0].mxu0
    %353 = vdwg.mxu0
    %354 = vrot.lane.b32.xlu0 %v253, 127
    %v355 = vpop.permute.xlu0 %354
    %v356 = vsel %vm170, %v355, 0.0
    %s357 = scalar_lea.vmem [#allocation5], 8
    %v358 = vld [vmem:[%s357] sm:$0xf]
    %v359 = vpack.c.bf16 %v356, %v356
    %v361 = vsel %vm73, %v358, 0
    %v364 = vsel %vm77, %v359, 0
    %366 = vmatprep.subr.bf16.mxu0 0
    %367 = vmatpush1.bf16.msra.mxu0 %v364
    %368 = vmatprep.subr.bf16.mxu0 0
    %369 = vmatpush1.bf16.msra.mxu0 0
    %370 = vmatprep.subr.bf16.mxu0 0
    %371 = vmatpush1.bf16.msra.mxu0 0
    %372 = vmatprep.subr.bf16.mxu0 0
    %373 = vmatpush1.bf16.msra.mxu0 0
    %374 = vmatprep.subr.bf16.mxu0 0
    %375 = vmatpush1.bf16.msra.mxu0 0
    %376 = vmatprep.subr.bf16.mxu0 0
    %377 = vmatpush1.bf16.msra.mxu0 0
    %378 = vmatprep.subr.bf16.mxu0 0
    %379 = vmatpush1.bf16.msra.mxu0 0
    %380 = vmatprep.subr.bf16.mxu0 0
    %381 = vmatpush1.bf16.msra.mxu0 0
    %382 = vmatprep.subr.bf16.mxu0 0
    %383 = vmatpush1.bf16.msra.mxu0 0
    %384 = vmatprep.subr.bf16.mxu0 0
    %385 = vmatpush1.bf16.msra.mxu0 0
    %386 = vmatprep.subr.bf16.mxu0 0
    %387 = vmatpush1.bf16.msra.mxu0 0
    %388 = vmatprep.subr.bf16.mxu0 0
    %389 = vmatpush1.bf16.msra.mxu0 0
    %390 = vmatprep.subr.bf16.mxu0 0
    %391 = vmatpush1.bf16.msra.mxu0 0
    %392 = vmatprep.subr.bf16.mxu0 0
    %393 = vmatpush1.bf16.msra.mxu0 0
    %394 = vmatprep.subr.bf16.mxu0 0
    %395 = vmatpush1.bf16.msra.mxu0 0
    %396 = vmatprep.subr.bf16.mxu0 0
    %397 = vmatpush1.bf16.msra.mxu0 0
    %398 = vmatprep.mubr.bf16.mxu0 0
    %399 = vmatmul.mubr.bf16.gmra.mrb[0].mxu0 %v361
    %v400 = vpop.f32.mrb[0].mxu0
    %v401 = vadd.f32 0.0, %v400
    %v402 = vpop.f32.mrb[0].mxu0
    %v403 = vpop.f32.mrb[0].mxu0
    %v404 = vpop.f32.mrb[0].mxu0
    %405 = vdwg.mxu0
    %v406 = vadd.f32 %v349, %v401
    %407 = vadd.xlane.f32.xlu0 %v406
    %v408 = vpop.xlane.xlu0 %407
    %v409 = vmul.f32 %v408, 0.0078125
    %v410 = vmul.f32 %v406, %v406
    %411 = vadd.xlane.f32.xlu0 %v410
    %v412 = vpop.xlane.xlu0 %411
    %v413 = vmul.f32 %v412, 0.0078125
    %v414 = vmul.f32 %v409, %v409
    %v415 = vsub.f32 %v413, %v414
    %v416 = vadd.f32 %v415, 0.0001
    %v417 = vrsqrt.pop %v416
    %v418 = vmul.f32 %v61, %v417
    %v419 = vmul.f32 %v409, %v418
    %421 = vrot.lane.b32.xlu0 %v419, 1
    %v422 = vpop.permute.xlu0 %421
    %v424 = vsub.f32 %v61, %v422
    %426 = vset.pattern.permute.xlu0 2
    %427 = vperm.xlu0 %426, %v418
    %v428 = vpop.permute.xlu0 %427
    %v430 = vmul.f32 %v406, %v428
    %432 = vset.pattern.permute.xlu0 3
    %433 = vperm.xlu0 %432, %v424
    %v434 = vpop.permute.xlu0 %433
    %v436 = vadd.f32 %v430, %v434
    %v437 = vadd.f32 %v436, %v62
    %v438 = vmul.f32 %v437, 0.01
    %v439 = vmax.f32 %v437, %v438
    %440 = vst [vmem:[#allocation7] sm:$0xff] %v439
    // Predicated region
    $region26: #{tpu_custom_call.1} parent=1 // pred_check
      _
    $region27: #{tpu_custom_call.1} parent=1 // pred_check_branch
      %442 = sbr.rel (0) target = $region29
    $region28: #{tpu_custom_call.1} parent=1 // pred_region
      %s444 = ssub.s32 128, 128
      %445 = vsyncadd [#allocation4], %s444
      %s447 = sshll.u32 [#allocation7], 4
      %s448 = int_to_ptr.vmem [resolvable:$true] %s447
      %450 = dma.vmem_to_hbm [thread:$0]  %s448, 128, %s4, [#allocation4]
    $region29: #{tpu_custom_call.1} parent=1 // pred_fallthru
      _
    // Predicated region
    $region30: #{tpu_custom_call.1} parent=1 // pred_check
      _
    $region31: #{tpu_custom_call.1} parent=1 // pred_check_branch
      %452 = sbr.rel (0) target = $region33
    $region32: #{tpu_custom_call.1} parent=1 // pred_region
      %453 = dma.done [#allocation4], 128
    $region33: #{tpu_custom_call.1} parent=1 // pred_fallthru
      _
    %454 = vsyncpa [#allocation3], 1
    %455 = vsyncpa [#allocation6], 1
    %456 = vsyncpa [#allocation4], 1

</llo_original>
